<compile_context>
chip_gen: v5e
topology: v5e:2x2
jax: 0.10.0
libtpu: 0.0.40
codegen_flags: <defaults>
</compile_context>

<pallas_src>
import jax
import jax.numpy as jnp
from jax.experimental import pallas as pl
from jax.experimental.pallas import tpu as pltpu


def siamese_kernel(x1_ref, x2_ref, w1_ref, b1_ref, w23_ref, c_ref, out_ref):
    """Fused Siamese forward.

    x1_ref, x2_ref: (B, IN) f32 VMEM   -- the two inputs (shared weights).
    w1_ref : (IN, HID) bf16, b1_ref: (1, HID) f32
    w23_ref: (HID, 2) bf16  -- col 0 = W2 @ W3[:EMB], col 1 = W2 @ W3[EMB:]
    c_ref  : (1, 1) f32 in SMEM -- folded scalar bias (b2@W3[:EMB]+b2@W3[EMB:]+b3)
    out_ref: (B, 1) f32
    """
    B = out_ref.shape[0]

    # Stack x1/x2 along the sublane (batch) axis inside the kernel: shared
    # weights -> one matmul chain over 2B rows, no wrapper-side concat kernel.
    x = jnp.concatenate([x1_ref[...], x2_ref[...]], axis=0).astype(jnp.bfloat16)

    # embed + folded head: relu(x @ W1 + b1) @ W23
    h = jnp.dot(x, w1_ref[...], preferred_element_type=jnp.float32) + b1_ref[...]
    h = jnp.maximum(h, 0.0)
    r = jnp.dot(h.astype(jnp.bfloat16), w23_ref[...],
                preferred_element_type=jnp.float32)

    # cat(e1, e2) @ W3 + b3  ==  r[:B, 0] + r[B:, 1] + c   (B is sublane-aligned)
    out = r[:B, 0:1] + r[B:, 1:2] + c_ref[0, 0]
    out_ref[...] = out.astype(out_ref.dtype)


def prepare_params(params):
    """One-time (init-time) parameter transform for the kernel.

    Algebraically folds Linear(HID,EMB) and the comparison Linear(2*EMB,1)
    into a single (HID, 2) matrix + scalar.  Fold is computed in f32, then
    matmul weights are cast to bf16.  Not on the per-call path.
    """
    w1, b1, w2, b2, w3, b3 = params
    emb = w2.shape[1]
    w3a = w3[:emb, :]                       # (EMB, 1)
    w3b = w3[emb:, :]                       # (EMB, 1)
    w23 = jnp.concatenate([w2 @ w3a, w2 @ w3b], axis=1)        # (HID, 2) f32
    c = (b2 @ w3a + b2 @ w3b).reshape(()) + b3.reshape(())     # scalar f32
    return (
        w1.astype(jnp.bfloat16),
        b1.astype(jnp.float32),
        w23.astype(jnp.bfloat16),
        c.reshape(1, 1).astype(jnp.float32),
    )


@jax.jit
def siamese_forward(x1, x2, kparams):
    w1, b1, w23, c = kparams
    B = x1.shape[0]

    out = pl.pallas_call(
        siamese_kernel,
        out_shape=jax.ShapeDtypeStruct((B, 1), jnp.float32),
        # Tiny problem: every operand fits VMEM as a single full block, so no
        # grid / tiling is needed (see production TODO at top of file).
        in_specs=[
            pl.BlockSpec(memory_space=pltpu.VMEM),              # x1
            pl.BlockSpec(memory_space=pltpu.VMEM),              # x2
            pl.BlockSpec(memory_space=pltpu.VMEM),              # w1
            pl.BlockSpec(memory_space=pltpu.VMEM),              # b1
            pl.BlockSpec(memory_space=pltpu.VMEM),              # w23 (HID, 2)
            pl.BlockSpec(memory_space=pltpu.MemorySpace.SMEM),  # c scalar
        ],
        out_specs=pl.BlockSpec(memory_space=pltpu.VMEM),
    )(x1, x2, w1, b1, w23, c)

    # torch `.squeeze()` on (B, 1) -> (B,)
    return jnp.squeeze(out)


def init_params(key, in_features, hidden, emb):
    """Deterministic synthetic parameters (no checkpoint load), f32."""
    ks = jax.random.split(key, 6)
    scale = 0.1
    w1 = scale * jax.random.normal(ks[0], (in_features, hidden), jnp.float32)
    b1 = scale * jax.random.normal(ks[1], (1, hidden), jnp.float32)
    w2 = scale * jax.random.normal(ks[2], (hidden, emb), jnp.float32)
    b2 = scale * jax.random.normal(ks[3], (1, emb), jnp.float32)
    w3 = scale * jax.random.normal(ks[4], (2 * emb, 1), jnp.float32)
    b3 = scale * jax.random.normal(ks[5], (1, 1), jnp.float32)
    return (w1, b1, w2, b2, w3, b3)


def siamese_reference(x1, x2, params):
    """Pure-JAX f32 reference matching the PyTorch forward semantics."""
    w1, b1, w2, b2, w3, b3 = params

    def embed(x):
        h = jnp.maximum(x @ w1 + b1, 0.0)
        return h @ w2 + b2

    e1 = embed(x1)
    e2 = embed(x2)
    combined = jnp.concatenate([e1, e2], axis=1)
    return jnp.squeeze(combined @ w3 + b3)


if __name__ == "__main__":
    # B is a multiple of the f32 sublane quantum (8) so the r[:B]/r[B:] split
    # stays on a vreg tile boundary.
    B, IN, HID, EMB = 8, 32, 64, 16

    key = jax.random.PRNGKey(0)
    kx1, kx2, kp = jax.random.split(key, 3)
    x1 = jax.random.normal(kx1, (B, IN), jnp.float32)
    x2 = jax.random.normal(kx2, (B, IN), jnp.float32)

    params = init_params(kp, IN, HID, EMB)
    kparams = jax.tree_util.tree_map(jax.block_until_ready, prepare_params(params))

    out = jax.block_until_ready(siamese_forward(x1, x2, kparams))
    ref = jax.block_until_ready(siamese_reference(x1, x2, params))

    assert out.shape == (B,), out.shape
    # bf16 MXU inputs (fold computed in f32) vs. pure-f32 reference: loosened
    # tolerance (bf16 has ~3 decimal digits of mantissa).
    assert jnp.allclose(out, ref, atol=3e-2, rtol=3e-2), (out, ref)

    print("KERNEL_OK")
</pallas_src>

<mosaic_0001>
module attributes {stable_mosaic.version = 11 : i64} {
  func.func @siamese_kernel(%arg0: memref<8x32xf32, #tpu.memory_space<vmem>>, %arg1: memref<8x32xf32, #tpu.memory_space<vmem>>, %arg2: memref<32x64xbf16, #tpu.memory_space<vmem>>, %arg3: memref<1x64xf32, #tpu.memory_space<vmem>>, %arg4: memref<64x2xbf16, #tpu.memory_space<vmem>>, %arg5: memref<1x1xf32, #tpu.memory_space<smem>>, %arg6: memref<8x1xf32, #tpu.memory_space<vmem>>) attributes {dimension_semantics = [], scalar_prefetch = 0 : i64, scratch_operands = 0 : i64, tpu.core_type = #tpu.core_type<tc>} {
    %c0 = arith.constant 0 : index
    %c0_0 = arith.constant 0 : index
    %0 = vector.load %arg0[%c0, %c0_0] : memref<8x32xf32, #tpu.memory_space<vmem>>, vector<8x32xf32>
    %c0_1 = arith.constant 0 : index
    %c0_2 = arith.constant 0 : index
    %1 = vector.load %arg1[%c0_1, %c0_2] : memref<8x32xf32, #tpu.memory_space<vmem>>, vector<8x32xf32>
    %2 = tpu.concatenate %0, %1 in 0 : vector<8x32xf32>, vector<8x32xf32> -> vector<16x32xf32>
    %3 = arith.truncf %2 : vector<16x32xf32> to vector<16x32xbf16>
    %c0_3 = arith.constant 0 : index
    %c0_4 = arith.constant 0 : index
    %4 = vector.load %arg2[%c0_3, %c0_4] : memref<32x64xbf16, #tpu.memory_space<vmem>>, vector<32x64xbf16>
    %cst = arith.constant dense<0.000000e+00> : vector<16x64xf32>
    %5 = tpu.matmul %3, %4, %cst {dimension_numbers = #tpu.dot_dimension_numbers<[1], [0], [0], [1], [0, 0, 1, 1], [], []>} : vector<16x32xbf16>, vector<32x64xbf16>, vector<16x64xf32> -> vector<16x64xf32>
    %c0_5 = arith.constant 0 : index
    %c0_6 = arith.constant 0 : index
    %6 = vector.load %arg3[%c0_5, %c0_6] : memref<1x64xf32, #tpu.memory_space<vmem>>, vector<1x64xf32>
    %7 = vector.broadcast %6 : vector<1x64xf32> to vector<16x64xf32>
    %8 = arith.addf %5, %7 : vector<16x64xf32>
    %cst_7 = arith.constant 0.000000e+00 : f32
    %9 = vector.broadcast %cst_7 : f32 to vector<16x64xf32>
    %10 = arith.maximumf %8, %9 : vector<16x64xf32>
    %11 = arith.truncf %10 : vector<16x64xf32> to vector<16x64xbf16>
    %c0_8 = arith.constant 0 : index
    %c0_9 = arith.constant 0 : index
    %12 = vector.load %arg4[%c0_8, %c0_9] : memref<64x2xbf16, #tpu.memory_space<vmem>>, vector<64x2xbf16>
    %cst_10 = arith.constant dense<0.000000e+00> : vector<16x2xf32>
    %13 = tpu.matmul %11, %12, %cst_10 {dimension_numbers = #tpu.dot_dimension_numbers<[1], [0], [0], [1], [0, 0, 1, 1], [], []>} : vector<16x64xbf16>, vector<64x2xbf16>, vector<16x2xf32> -> vector<16x2xf32>
    %14 = vector.extract_strided_slice %13 {offsets = [0, 0], sizes = [8, 1], strides = [1, 1]} : vector<16x2xf32> to vector<8x1xf32>
    %15 = vector.extract_strided_slice %13 {offsets = [8, 1], sizes = [8, 1], strides = [1, 1]} : vector<16x2xf32> to vector<8x1xf32>
    %16 = arith.addf %14, %15 : vector<8x1xf32>
    %c0_11 = arith.constant 0 : index
    %c0_12 = arith.constant 0 : index
    %17 = memref.load %arg5[%c0_11, %c0_12] : memref<1x1xf32, #tpu.memory_space<smem>>
    %18 = vector.broadcast %17 : f32 to vector<8x1xf32>
    %19 = arith.addf %16, %18 : vector<8x1xf32>
    %c0_13 = arith.constant 0 : index
    %c0_14 = arith.constant 0 : index
    %20 = vector.load %arg6[%c0_13, %c0_14] : memref<8x1xf32, #tpu.memory_space<vmem>>, vector<8x1xf32>
    tpu.vector_store %arg6[%c0_13, %c0_14], %19 {strides = array<i32>} : memref<8x1xf32, #tpu.memory_space<vmem>>, vector<8x1xf32>,
    return
  }
}

</mosaic_0001>

<llo_original>
// kernel: siamese_forward.1
$region0: #{siamese_forward.1}
  #allocation0 [shape = 'u32[]', space=smem, size = 0x4, offset = 0x4, fixed_abs, tag = 'smem constant byte address 0x4 - core index']
  #allocation1 [shape = 'u32[72,128]{1,0:T(1,128)}', space=vmem, size = 0x9000, scoped, tag = 'internal scratch']
  #allocation2 [shape = 'f32[1,1]{1,0:T(1,128)S(6)}', space=smem, size = 0x200, scoped, tag = 'scoped memory for siamese_forward.1']
  %s0 = inlined_call_operand.vmem [shape: f32[8,32], index: 0, kind: input, shape index: {}]
  %s1 = inlined_call_operand.vmem [shape: f32[8,32], index: 1, kind: input, shape index: {}]
  %s2 = inlined_call_operand.vmem [shape: bf16[32,64], index: 2, kind: input, shape index: {}]
  %s3 = inlined_call_operand.vmem [shape: f32[1,64], index: 3, kind: input, shape index: {}]
  %s4 = inlined_call_operand.vmem [shape: bf16[64,2], index: 4, kind: input, shape index: {}]
  %s5 = inlined_call_operand.<no memory space> [shape: f32[1,1], index: 5, kind: input, shape index: {}]
  %s6 = inlined_call_operand.vmem [shape: f32[8,1], index: 6, kind: output, shape index: {}]
  %s7 = sld [smem:[#allocation0]]
  $region34: #{siamese_forward.1} parent=0
    _
  %s9 = ssub.s32 1, %s7
  %s10 = scalar_select 0, %s9, %s7
  %11 = sst [smem:[#allocation2]] %s5
  // Predicated region
  $region2: #{siamese_forward.1} parent=0 // pred_check
    _
  $region3: #{siamese_forward.1} parent=0 // pred_check_branch
    %13 = sbr.rel (0) target = $region5
  $region4: #{siamese_forward.1} parent=0 // pred_region
    _
  $region5: #{siamese_forward.1} parent=0 // pred_fallthru
    _
  // Predicated region
  $region6: #{siamese_forward.1} parent=0 // pred_check
    _
  $region7: #{siamese_forward.1} parent=0 // pred_check_branch
    %15 = sbr.rel (0) target = $region9
  $region8: #{siamese_forward.1} parent=0 // pred_region
    _
  $region9: #{siamese_forward.1} parent=0 // pred_fallthru
    _
  // Predicated region
  $region10: #{siamese_forward.1} parent=0 // pred_check
    _
  $region11: #{siamese_forward.1} parent=0 // pred_check_branch
    %17 = sbr.rel (0) target = $region13
  $region12: #{siamese_forward.1} parent=0 // pred_region
    _
  $region13: #{siamese_forward.1} parent=0 // pred_fallthru
    _
  // Predicated region
  $region14: #{siamese_forward.1} parent=0 // pred_check
    _
  $region15: #{siamese_forward.1} parent=0 // pred_check_branch
    %19 = sbr.rel (0) target = $region17
  $region16: #{siamese_forward.1} parent=0 // pred_region
    _
  $region17: #{siamese_forward.1} parent=0 // pred_fallthru
    _
  // Predicated region
  $region18: #{siamese_forward.1} parent=0 // pred_check
    _
  $region19: #{siamese_forward.1} parent=0 // pred_check_branch
    %21 = sbr.rel (0) target = $region21
  $region20: #{siamese_forward.1} parent=0 // pred_region
    _
  $region21: #{siamese_forward.1} parent=0 // pred_fallthru
    _
  // Predicated region
  $region22: #{siamese_forward.1} parent=0 // pred_check
    _
  $region23: #{siamese_forward.1} parent=0 // pred_check_branch
    %23 = sbr.rel (0) target = $region25
  $region24: #{siamese_forward.1} parent=0 // pred_region
    _
  $region25: #{siamese_forward.1} parent=0 // pred_fallthru
    _
  %v25 = vld [vmem:[%s0] sm:$0xff]
  %v26 = vld [vmem:[%s1] sm:$0xff]
  %v27 = vpack.c.bf16 %v26, %v25
  %v28 = vld [vmem:[%s2] sm:$0xf]
  %v29 = vld [vmem:[%s2 + $0x4] sm:$0xf]
  %v30 = vld [vmem:[%s2 + $0x8] sm:$0xf]
  %v31 = vld [vmem:[%s2 + $0xc] sm:$0xf]
  %v32 = vld [vmem:[%s3] sm:$0x1]
  %v34 = vperm.slane %v32, 0
  %v40 = vunpack.c.l.b16 %v28
  %v41 = vunpack.c.l.b16 %v29
  %v42 = vunpack.c.l.b16 %v30
  %v43 = vunpack.c.l.b16 %v31
  %v44 = vpack.c.b16 %v41, %v40
  %v45 = vpack.c.b16 %v43, %v42
  %vm48 = vcmask 261120
  %v50 = vsel %vm48, %v27, 0
  %52 = vmatpush.bf16.msra.mxu0 0
  %53 = vmatpush.bf16.msra.mxu0 0
  %54 = vmatpush.bf16.msra.mxu0 0
  %55 = vmatpush.bf16.msra.mxu0 0
  %56 = vmatpush.bf16.msra.mxu0 0
  %57 = vmatpush.bf16.msra.mxu0 0
  %58 = vmatpush.bf16.msra.mxu0 %v45
  %59 = vmatpush.bf16.msra.mxu0 %v44
  %60 = vmatmul.bf16.gmra.mxu0 %v50
  %v61 = vpop.f32.mrf.mxu0
  %v62 = vadd.f32 %v34, %v61
  %v63 = vpop.f32.mrf.mxu0
  %v64 = vadd.f32 %v34, %v63
  %65 = vdwg.mxu0
  %v66 = vmax.f32 %v62, 0.0
  %v67 = vmax.f32 %v64, 0.0
  %v68 = vpack.c.bf16 %v67, %v66
  %v69 = vld [vmem:[%s4] sm:$0xf]
  %v70 = vld [vmem:[%s4 + $0x4] sm:$0xf]
  %v71 = vld [vmem:[%s4 + $0x8] sm:$0xf]
  %v72 = vld [vmem:[%s4 + $0xc] sm:$0xf]
  %v73 = vld [vmem:[%s4 + $0x10] sm:$0xf]
  %v74 = vld [vmem:[%s4 + $0x14] sm:$0xf]
  %v75 = vld [vmem:[%s4 + $0x18] sm:$0xf]
  %v76 = vld [vmem:[%s4 + $0x1c] sm:$0xf]
  %v85 = vunpack.c.l.b16 %v69
  %v86 = vunpack.c.l.b16 %v70
  %v87 = vunpack.c.l.b16 %v71
  %v88 = vunpack.c.l.b16 %v72
  %v89 = vunpack.c.l.b16 %v73
  %v90 = vunpack.c.l.b16 %v74
  %v91 = vunpack.c.l.b16 %v75
  %v92 = vunpack.c.l.b16 %v76
  %v93 = vpack.c.b16 %v86, %v85
  %v94 = vpack.c.b16 %v88, %v87
  %v95 = vpack.c.b16 %v90, %v89
  %v96 = vpack.c.b16 %v92, %v91
  %vm101 = vcmask 523264
  %v103 = vsel %vm101, %v68, 0
  %105 = vmatpush.bf16.msra.mxu0 0
  %106 = vmatpush.bf16.msra.mxu0 0
  %107 = vmatpush.bf16.msra.mxu0 0
  %108 = vmatpush.bf16.msra.mxu0 0
  %109 = vmatpush.bf16.msra.mxu0 %v96
  %110 = vmatpush.bf16.msra.mxu0 %v95
  %111 = vmatpush.bf16.msra.mxu0 %v94
  %112 = vmatpush.bf16.msra.mxu0 %v93
  %113 = vmatmul.bf16.gmra.mxu0 %v103
  %v114 = vpop.f32.mrf.mxu0
  %v115 = vadd.f32 0.0, %v114
  %v116 = vpop.f32.mrf.mxu0
  %v117 = vadd.f32 0.0, %v116
  %118 = vdwg.mxu0
  %120 = vrot.lane.b32.xlu0 %v117, 127
  %v121 = vpop.permute.xlu0 %120
  %v123 = vadd.f32 %v115, %v121
  %s124 = sld [smem:[#allocation2]]
  %v125 = vstv %s124
  %v126 = vadd.f32 %v123, %v125
  %vm127 = vcmask 7168
  %128 = vst.msk [vmem:[%s6] sm:$0xff] %vm127, %v126
  // Predicated region
  $region26: #{siamese_forward.1} parent=0 // pred_check
    _
  $region27: #{siamese_forward.1} parent=0 // pred_check_branch
    %130 = sbr.rel (0) target = $region29
  $region28: #{siamese_forward.1} parent=0 // pred_region
    _
  $region29: #{siamese_forward.1} parent=0 // pred_fallthru
    _
  // Predicated region
  $region30: #{siamese_forward.1} parent=0 // pred_check
    _
  $region31: #{siamese_forward.1} parent=0 // pred_check_branch
    %132 = sbr.rel (0) target = $region33
  $region32: #{siamese_forward.1} parent=0 // pred_region
    _
  $region33: #{siamese_forward.1} parent=0 // pred_fallthru
    _

</llo_original>
